<compile_context>
chip_gen: v5e
topology: v5e:2x2
jax: 0.10.0
libtpu: 0.0.40
codegen_flags: <defaults>
</compile_context>

<pallas_src>
import functools

import numpy as np
import jax
import jax.numpy as jnp
from jax.experimental import pallas as pl
from jax.experimental.pallas import tpu as pltpu

LANE = 128  # TPU lane width; all class/feature axes are padded to a multiple of this


# ------------------------- small padding helpers -------------------------

def _round_up(v, m):
    return ((v + m - 1) // m) * m


def pad_last(x, m=LANE):
    tgt = _round_up(x.shape[-1], m)
    if tgt == x.shape[-1]:
        return x
    cfg = [(0, 0)] * (x.ndim - 1) + [(0, tgt - x.shape[-1])]
    return jnp.pad(x, cfg)


def pad_rows(x, m):
    tgt = _round_up(x.shape[0], m)
    if tgt == x.shape[0]:
        return x
    return jnp.pad(x, ((0, tgt - x.shape[0]),) + ((0, 0),) * (x.ndim - 1))


# ------------------------- Pallas kernels -------------------------

def _xu_kernel(x_ref, u_ref, o_ref):
    """One row block of the shared-weight transition matmul: o = x @ U (f32 acc)."""
    o_ref[...] = jnp.dot(x_ref[...], u_ref[...],
                         preferred_element_type=jnp.float32)


def xu_matmul(x_rows, u, row_block=256):
    """x_rows: (rows, Dp) bf16, u: (Dp, Dp) bf16 -> (rows, Dp) f32.

    Row-block grid (U resident across steps, x/o double-buffered).  The batch
    dimension is folded into rows, so the MXU sees one dense M = bs*n matmul
    instead of bs tiny ones."""
    rows, dp = x_rows.shape
    rb = min(row_block, _round_up(rows, 16))   # bf16 sublane tile = 16 rows
    xp = pad_rows(x_rows, rb)
    rp = xp.shape[0]
    out = pl.pallas_call(
        _xu_kernel,
        out_shape=jax.ShapeDtypeStruct((rp, dp), jnp.float32),
        grid=(rp // rb,),
        in_specs=[pl.BlockSpec((rb, dp), lambda i: (i, 0)),
                  pl.BlockSpec((dp, dp), lambda i: (0, 0))],
        out_specs=pl.BlockSpec((rb, dp), lambda i: (i, 0)),
        compiler_params=pltpu.CompilerParams(
            dimension_semantics=("parallel",),       # shards row blocks across TCs
            vmem_limit_bytes=32 * 1024 * 1024),      # stay under v7x scoped budget
    )(xp, u)
    return out[:rows]


def _masked_ce_sums(pred, true, c_valid):
    """Masked CE over one segment.  pred/true: (rows, LANE) f32, c_valid valid
    lanes.  Returns ((1,1) sum, (1,1) count).  Row mask = (true != 0).any(-1),
    target = first argmax of true (exact one-hot -> torch.argmax semantics)."""
    rows, cp = pred.shape
    lane = jax.lax.broadcasted_iota(jnp.int32, (rows, cp), 1)
    lane_ok = lane < c_valid
    t = jnp.where(lane_ok, true, 0.0)
    mask = jnp.max(jnp.where(t != 0.0, 1.0, 0.0), axis=-1, keepdims=True)   # (rows,1)
    row_max = jnp.max(t, axis=-1, keepdims=True)
    cand = jnp.where((t == row_max) & lane_ok, lane, jnp.int32(cp))
    tgt = jnp.min(cand, axis=-1, keepdims=True)
    onehot = (lane == tgt).astype(jnp.float32)
    # logsumexp(pred) - pred[target], padded lanes masked out (f32 math only)
    p = jnp.where(lane_ok, pred, -1e30)
    m = jnp.max(p, axis=-1, keepdims=True)
    lse = jnp.log(jnp.sum(jnp.exp(p - m), axis=-1, keepdims=True)) + m
    picked = jnp.sum(jnp.where(lane_ok, pred, 0.0) * onehot, axis=-1, keepdims=True)
    loss = (lse - picked) * mask
    return (jnp.sum(loss, axis=0, keepdims=True)[:1, :1],
            jnp.sum(mask, axis=0, keepdims=True)[:1, :1])


def _denoise_ce_kernel(cond_ref, wc_ref, x_ref, w1x_ref, w2x_ref, tx_ref,
                       e_ref, w1e_ref, w2e_ref, te_ref, acc_ref,
                       *, bs, n, c_node, c_edge):
    """Fused: cond projection + node MLP + edge MLP + masked node/edge CE.

    Batch is folded into rows (M = bs, bs*n, bs*n*n matmuls); cond_h is
    broadcast on-chip via a (bs, rows_per_batch, H) reshape-add; logits stay in
    VMEM and feed the CE epilogue directly (no HBM round-trip).  Output is one
    lane-dense (1, 128) accumulator: [sum_x, cnt_x, sum_e, cnt_e, 0...]."""
    cond_h = jnp.dot(cond_ref[...], wc_ref[...],
                     preferred_element_type=jnp.float32)               # (bs, Hp) f32

    # ---- node path: (bs*n, lane) ----
    hx = jnp.dot(x_ref[...], w1x_ref[...],
                 preferred_element_type=jnp.float32)                   # (bs*n, Hp)
    hx = hx.reshape(bs, n, -1) + cond_h[:, None, :]
    hx = jnp.maximum(hx, 0.0).reshape(bs * n, -1).astype(w2x_ref.dtype)
    logits_x = jnp.dot(hx, w2x_ref[...],
                       preferred_element_type=jnp.float32)             # (bs*n, lane)

    # ---- edge path: (bs*n*n, lane) ----
    he = jnp.dot(e_ref[...], w1e_ref[...],
                 preferred_element_type=jnp.float32)                   # (bs*n*n, Hp)
    he = he.reshape(bs, n * n, -1) + cond_h[:, None, :]
    he = jnp.maximum(he, 0.0).reshape(bs * n * n, -1).astype(w2e_ref.dtype)
    logits_e = jnp.dot(he, w2e_ref[...],
                       preferred_element_type=jnp.float32)             # (bs*n*n, lane)

    # ---- fused masked CE epilogue (f32) ----
    sum_x, cnt_x = _masked_ce_sums(logits_x, tx_ref[...], c_node)
    sum_e, cnt_e = _masked_ce_sums(logits_e, te_ref[...], c_edge)

    slot = jax.lax.broadcasted_iota(jnp.int32, (1, acc_ref.shape[-1]), 1)
    acc_ref[...] = (jnp.where(slot == 0, sum_x, 0.0)
                    + jnp.where(slot == 1, cnt_x, 0.0)
                    + jnp.where(slot == 2, sum_e, 0.0)
                    + jnp.where(slot == 3, cnt_e, 0.0))


def fused_denoise_ce(cond, wc, x_in, w1x, w2x, tx, e_in, w1e, w2e, te,
                     *, bs, n, c_node, c_edge):
    """Single invocation at these toy sizes (whole working set < 1 MiB).

    TODO(synk): at production row counts, grid over 256-row blocks of the
    node/edge rows ("parallel") with per-block partial (sum,count) accumulators."""
    kernel = functools.partial(_denoise_ce_kernel, bs=bs, n=n,
                               c_node=c_node, c_edge=c_edge)
    return pl.pallas_call(
        kernel,
        out_shape=jax.ShapeDtypeStruct((1, LANE), jnp.float32),
        compiler_params=pltpu.CompilerParams(vmem_limit_bytes=32 * 1024 * 1024),
    )(cond, wc, x_in, w1x, w2x, tx, e_in, w1e, w2e, te)


# ------------------------- glue / model -------------------------

def cosine_alpha_bar(t):
    s = 0.008
    f = jnp.cos(0.5 * jnp.pi * ((t + s) / (1.0 + s))) ** 2
    f0 = jnp.cos(0.5 * jnp.pi * (s / (1.0 + s))) ** 2
    return f / f0


class GraphDiTPallas:
    def __init__(self, key, max_n_nodes=8, Xdim=16, Edim=5, ydim=2,
                 hidden=32, T=10, lambda_train=(1.0, 5.0)):
        self.max_n_nodes = max_n_nodes
        self.Xdim = self.Xdim_output = Xdim
        self.Edim = self.Edim_output = Edim
        self.ydim = ydim
        self.hidden = hidden
        self.T = T
        self.lambda_train = lambda_train
        self.text_input_size = 768
        self.active_index = np.arange(Xdim)   # subset of 118 atom classes

        ks = jax.random.split(key, 10)
        n = max_n_nodes
        D = Xdim + n * Edim
        self.D = D
        self.Dp = _round_up(D, LANE)

        # marginal transition model (utils.MarginalTransition); only U is needed
        # because Qt_bar = alpha*I + (1-alpha)*U is applied via one shared matmul
        x_marg = jax.random.uniform(ks[0], (Xdim,)) + 0.1
        x_marg = x_marg / jnp.sum(x_marg)
        e_marg = jax.random.uniform(ks[1], (Edim,)) + 0.1
        e_marg = e_marg / jnp.sum(e_marg)
        xe = jax.random.uniform(ks[2], (Xdim, Edim)) + 0.1
        xe = xe / jnp.sum(xe, axis=-1, keepdims=True)
        ex = jax.random.uniform(ks[3], (Edim, Xdim)) + 0.1
        ex = ex / jnp.sum(ex, axis=-1, keepdims=True)
        u_x = jnp.broadcast_to(x_marg, (Xdim, Xdim))
        u_e = jnp.tile(jnp.broadcast_to(e_marg, (Edim, Edim)), (n, n))
        u_xe = jnp.tile(xe, (1, n))
        u_ex = jnp.tile(ex, (n, 1))
        u = jnp.concatenate(
            [jnp.concatenate([u_x, u_xe], axis=1),
             jnp.concatenate([u_ex, u_e], axis=1)], axis=0).astype(jnp.float32)
        # lane-dense, zero-padded U, bf16 for the MXU (alpha stays f32 outside)
        self.u_pad_bf16 = (jnp.zeros((self.Dp, self.Dp), jnp.float32)
                           .at[:D, :D].set(u).astype(jnp.bfloat16))

        # TODO(synk): the real Transformer denoiser definition is not provided in the
        # reference; stand-in = conditional 2-layer MLPs over nodes and edges.
        cond_head = 1 + ydim                       # [t, y]
        self.cond_head = cond_head
        self.cond_head_pad = _round_up(cond_head, LANE)          # text stays 128-aligned
        cond_dim = cond_head + self.text_input_size
        self.cond_k_pad = self.cond_head_pad + self.text_input_size

        sc = 0.02
        Wc = jax.random.normal(ks[4], (cond_dim, hidden)) * sc
        W1x = jax.random.normal(ks[5], (Xdim, hidden)) * sc
        W2x = jax.random.normal(ks[6], (hidden, Xdim)) * sc
        W1e = jax.random.normal(ks[7], (Edim, hidden)) * sc
        W2e = jax.random.normal(ks[8], (hidden, Edim)) * sc

        hp = _round_up(hidden, LANE)
        xp = _round_up(Xdim, LANE)
        ep = _round_up(Edim, LANE)
        # zero-padded, bf16 weights built once at init (no per-call casts / pads)
        wc_pad = jnp.zeros((self.cond_k_pad, hp), jnp.float32)
        wc_pad = wc_pad.at[:cond_head, :hidden].set(Wc[:cond_head])
        wc_pad = wc_pad.at[self.cond_head_pad:self.cond_head_pad + self.text_input_size,
                           :hidden].set(Wc[cond_head:])
        self.Wc_pad = wc_pad.astype(jnp.bfloat16)
        self.W1x_pad = jnp.zeros((xp, hp), jnp.float32).at[:Xdim, :hidden].set(W1x).astype(jnp.bfloat16)
        self.W2x_pad = jnp.zeros((hp, xp), jnp.float32).at[:hidden, :Xdim].set(W2x).astype(jnp.bfloat16)
        self.W1e_pad = jnp.zeros((ep, hp), jnp.float32).at[:Edim, :hidden].set(W1e).astype(jnp.bfloat16)
        self.W2e_pad = jnp.zeros((hp, ep), jnp.float32).at[:hidden, :Edim].set(W2e).astype(jnp.bfloat16)

    # ---- utils.to_dense + encode_no_edge ----
    def _to_dense(self, data_x, edge_index, data_e, batch):
        batch_np = np.asarray(batch)
        bs = int(batch_np.max()) + 1
        n = self.max_n_nodes
        pos = np.zeros_like(batch_np)
        counts = {}
        for i, b in enumerate(batch_np):
            b = int(b)
            pos[i] = counts.get(b, 0)
            counts[b] = int(pos[i]) + 1
        X = jnp.zeros((bs, n, self.Xdim_output), jnp.float32).at[batch_np, pos].set(data_x)
        node_mask = jnp.zeros((bs, n), jnp.bool_).at[batch_np, pos].set(True)
        src, dst = np.asarray(edge_index)
        E = jnp.zeros((bs, n, n, self.Edim_output), jnp.float32)
        E = E.at[batch_np[src], pos[src], pos[dst]].set(data_e)
        # encode_no_edge
        no_edge = jnp.sum(E, axis=-1) == 0
        E = E.at[..., 0].set(jnp.where(no_edge, 1.0, E[..., 0]))
        diag = jnp.eye(n, dtype=bool)[None, :, :, None]
        E = jnp.where(diag, 0.0, E)
        return X, E, node_mask

    # ---- apply_noise ----
    def apply_noise(self, X, E, y, node_mask, rng):
        bs, n, dx = X.shape
        de = self.Edim_output
        k_t, k_x, k_e = jax.random.split(rng, 3)
        t_int = jax.random.randint(k_t, (bs, 1), 0, self.T + 1).astype(jnp.float32)
        t_float = t_int / self.T
        s_float = (t_int - 1.0) / self.T
        alpha_t_bar = cosine_alpha_bar(t_float)
        alpha_s_bar = cosine_alpha_bar(s_float)
        beta_t = 1.0 - jnp.clip(alpha_t_bar / jnp.maximum(alpha_s_bar, 1e-6), 0.0, 1.0)

        # Qt_bar = a*I + (1-a)*U  ->  prob = a*x + (1-a)*(x @ U)
        # one shared-weight matmul for the whole batch; alpha applied in f32 (XLA axpy)
        X_all = jnp.concatenate([X, E.reshape(bs, n, -1)], axis=-1)          # (bs, n, D) f32
        X_all_pad = pad_last(X_all).reshape(bs * n, self.Dp).astype(jnp.bfloat16)
        xu = xu_matmul(X_all_pad, self.u_pad_bf16)                            # (bs*n, Dp) f32
        xu = xu.reshape(bs, n, self.Dp)[:, :, :self.D]
        prob_all = (alpha_t_bar[:, :, None] * X_all
                    + (1.0 - alpha_t_bar)[:, :, None] * xu)                   # (bs, n, D) f32
        probX = prob_all[:, :, :dx]
        probE = prob_all[:, :, dx:].reshape(bs, n, n, de)

        # sample_discrete_features
        probX = probX / jnp.maximum(jnp.sum(probX, -1, keepdims=True), 1e-12)
        probX = jnp.where(node_mask[..., None], probX, 1.0 / dx)
        X_idx = jax.random.categorical(k_x, jnp.log(jnp.maximum(probX, 1e-12)), axis=-1)

        probE = probE / jnp.maximum(jnp.sum(probE, -1, keepdims=True), 1e-12)
        pair_mask = (node_mask[:, :, None] & node_mask[:, None, :])[..., None]
        probE = jnp.where(pair_mask, probE, 1.0 / de)
        E_idx = jax.random.categorical(k_e, jnp.log(jnp.maximum(probE, 1e-12)), axis=-1)
        E_idx = jnp.triu(E_idx, k=1)
        E_idx = E_idx + jnp.swapaxes(E_idx, 1, 2)

        X_t = jax.nn.one_hot(X_idx, dx, dtype=jnp.float32) * node_mask[..., None].astype(jnp.float32)
        E_t = jax.nn.one_hot(E_idx, de, dtype=jnp.float32) * pair_mask.astype(jnp.float32)
        return {'t_int': t_int, 't': t_float, 'beta_t': beta_t,
                'alpha_s_bar': alpha_s_bar, 'alpha_t_bar': alpha_t_bar,
                'X_t': X_t, 'E_t': E_t, 'y_t': y, 'node_mask': node_mask}

    # ---- denoiser stand-in (_forward) + TrainLossDiscrete, fully fused ----
    def _denoise_loss(self, noisy, text_embedding, true_X, true_E):
        X_t, E_t, y_t, t = noisy['X_t'], noisy['E_t'], noisy['y_t'], noisy['t']
        bs, n, dx = X_t.shape
        de = E_t.shape[-1]
        # conditioning vector: [t, y, 0-pad to 128, text(768)] -> K = 896 (lane-dense)
        cond = jnp.concatenate(
            [t, jnp.nan_to_num(y_t),
             jnp.zeros((bs, self.cond_head_pad - self.cond_head), jnp.float32),
             text_embedding], axis=-1).astype(jnp.bfloat16)                  # (bs, 896)
        x_in = pad_last(X_t).reshape(bs * n, LANE).astype(jnp.bfloat16)      # (bs*n, 128)
        e_in = pad_last(E_t.reshape(bs, n * n, de)).reshape(bs * n * n, LANE).astype(jnp.bfloat16)
        tx = pad_last(true_X.reshape(bs * n, dx))                            # f32 targets
        te = pad_last(true_E.reshape(bs * n * n, de))

        acc = fused_denoise_ce(cond, self.Wc_pad, x_in, self.W1x_pad, self.W2x_pad, tx,
                               e_in, self.W1e_pad, self.W2e_pad, te,
                               bs=bs, n=n, c_node=dx, c_edge=de)
        loss_x = acc[0, 0] / jnp.maximum(acc[0, 1], 1.0)
        loss_e = acc[0, 2] / jnp.maximum(acc[0, 3], 1.0)
        return self.lambda_train[0] * loss_x + self.lambda_train[1] * loss_e

    # ---- GraphDiT.forward ----
    def forward(self, x, edge_index, edge_attr, graph_batch, properties,
                text_embedding, no_label_index, rng):
        properties = jnp.where(properties == no_label_index, jnp.nan, properties)
        data_x = jax.nn.one_hot(x, 118, dtype=jnp.float32)[:, self.active_index]
        data_e = jax.nn.one_hot(edge_attr, self.Edim, dtype=jnp.float32)
        X, E, node_mask = self._to_dense(data_x, edge_index, data_e, graph_batch)
        noisy = self.apply_noise(X, E, properties, node_mask, rng)
        return self._denoise_loss(noisy, text_embedding, X, E)


# ------------------------- main -------------------------

if __name__ == "__main__":
    key = jax.random.PRNGKey(0)
    k_model, k_x, k_text, k_prop, k_noise = jax.random.split(key, 5)

    model = GraphDiTPallas(k_model, max_n_nodes=8, Xdim=16, Edim=5, ydim=2,
                           hidden=32, T=10, lambda_train=(1.0, 5.0))

    # two small graphs: 7 nodes + 5 nodes
    num_nodes = 12
    graph_batch = np.array([0, 0, 0, 0, 0, 0, 0, 1, 1, 1, 1, 1], dtype=np.int32)
    x = jax.random.randint(k_x, (num_nodes,), 0, 16).astype(jnp.int32)
    # symmetric edge lists (both directions), edge types in [1, 5)
    edge_index = np.array(
        [[0, 1, 1, 2, 2, 3, 7, 8, 8, 9],
         [1, 0, 2, 1, 3, 2, 8, 7, 9, 8]], dtype=np.int32)
    edge_attr = np.array([1, 1, 2, 2, 3, 3, 1, 1, 2, 2], dtype=np.int32)

    no_label_index = -100.0
    properties = jnp.array([[0.5, no_label_index],
                            [1.5, 2.5]], dtype=jnp.float32)
    text_embedding = jax.random.normal(k_text, (2, 768), dtype=jnp.float32)

    loss = model.forward(jnp.asarray(x), edge_index, edge_attr, graph_batch,
                         properties, text_embedding, no_label_index, k_noise)
    loss = jax.block_until_ready(loss)
    assert jnp.isfinite(loss)
    print("KERNEL_OK")
</pallas_src>

<mosaic_0001>
module attributes {stable_mosaic.version = 11 : i64} {
  func.func @_xu_kernel(%arg0: i32, %arg1: memref<16x128xbf16, #tpu.memory_space<vmem>>, %arg2: memref<128x128xbf16, #tpu.memory_space<vmem>>, %arg3: memref<16x128xf32, #tpu.memory_space<vmem>>) attributes {dimension_semantics = [#tpu.dimension_semantics<parallel>], iteration_bounds = array<i64: 1>, scalar_prefetch = 0 : i64, scratch_operands = 0 : i64, tpu.core_type = #tpu.core_type<tc>, window_params = [{transform_indices = @transform_0, window_bounds = array<i64: 16, 128>}, {pipeline_mode = #tpu.pipeline_mode<synchronous>, transform_indices = @transform_1, window_bounds = array<i64: 128, 128>}, {transform_indices = @transform_2, window_bounds = array<i64: 16, 128>}]} {
    %c0 = arith.constant 0 : index
    %c0_0 = arith.constant 0 : index
    %0 = vector.load %arg1[%c0, %c0_0] : memref<16x128xbf16, #tpu.memory_space<vmem>>, vector<16x128xbf16>
    %c0_1 = arith.constant 0 : index
    %c0_2 = arith.constant 0 : index
    %1 = vector.load %arg2[%c0_1, %c0_2] : memref<128x128xbf16, #tpu.memory_space<vmem>>, vector<128x128xbf16>
    %cst = arith.constant dense<0.000000e+00> : vector<16x128xf32>
    %2 = tpu.matmul %0, %1, %cst {dimension_numbers = #tpu.dot_dimension_numbers<[1], [0], [0], [1], [0, 0, 1, 1], [], []>} : vector<16x128xbf16>, vector<128x128xbf16>, vector<16x128xf32> -> vector<16x128xf32>
    %c0_3 = arith.constant 0 : index
    %c0_4 = arith.constant 0 : index
    %3 = vector.load %arg3[%c0_3, %c0_4] : memref<16x128xf32, #tpu.memory_space<vmem>>, vector<16x128xf32>
    tpu.vector_store %arg3[%c0_3, %c0_4], %2 {strides = array<i32>} : memref<16x128xf32, #tpu.memory_space<vmem>>, vector<16x128xf32>,
    return
  }
  func.func @transform_0(%arg0: i32) -> (i32, i32) {
    %c0_i32 = arith.constant 0 : i32
    %c0_i32_0 = arith.constant 0 : i32
    return %arg0, %c0_i32 : i32, i32
  }
  func.func @transform_1(%arg0: i32) -> (i32, i32) {
    %c0_i32 = arith.constant 0 : i32
    %c0_i32_0 = arith.constant 0 : i32
    %c0_i32_1 = arith.constant 0 : i32
    return %c0_i32, %c0_i32_0 : i32, i32
  }
  func.func @transform_2(%arg0: i32) -> (i32, i32) {
    %c0_i32 = arith.constant 0 : i32
    %c0_i32_0 = arith.constant 0 : i32
    return %arg0, %c0_i32 : i32, i32
  }
}

</mosaic_0001>

<llo_original>
// kernel: tpu_custom_call.1
$region0: #{tpu_custom_call.1}
  #allocation0 [shape = 'u32[]', space=smem, size = 0x4, offset = 0x4, fixed_abs, tag = 'smem constant byte address 0x4 - core index']
  #allocation1 [shape = 'u32[72,128]{1,0:T(1,128)}', space=vmem, size = 0x9000, scoped, tag = 'internal scratch']
  %s0 = inlined_call_operand.hbm [shape: bf16[16,128], index: 0, kind: input, shape index: {}]
  %s1 = inlined_call_operand.hbm [shape: bf16[128,128], index: 1, kind: input, shape index: {}]
  %s2 = inlined_call_operand.hbm [shape: f32[16,128], index: 2, kind: output, shape index: {}]
  %s3 = sld [smem:[#allocation0]]
  $region26: #{tpu_custom_call.1} parent=0
    _
  %s5 = ssub.s32 1, %s3
  %s6 = scalar_select 0, %s5, %s3
  $region1: #{tpu_custom_call.1} parent=0
    #allocation2 [shape = 'u8[4096]{0}', space=vmem, size = 0x1000, scoped, tag = 'input window, operand 0, single buffered']
    #allocation3 [shape = 's32[1]{0}', space=sflag, size = 0x4, scoped, tag = 'scoped memory for tpu_custom_call.1']
    #allocation4 [shape = 's32[1]{0}', space=sflag, size = 0x4, scoped, tag = 'scoped memory for tpu_custom_call.1']
    #allocation5 [shape = 'u8[32768]{0}', space=vmem, size = 0x8000, scoped, tag = 'input window, operand 1, single buffered']
    #allocation6 [shape = 's32[1]{0}', space=sflag, size = 0x4, scoped, tag = 'scoped memory for tpu_custom_call.1']
    #allocation7 [shape = 'u8[8192]{0}', space=vmem, size = 0x2000, scoped, tag = 'output window, operand 0, single buffered']
    %7 = vsyncpa [#allocation3], 0
    %8 = vsyncpa [#allocation6], 0
    %9 = vsyncpa [#allocation4], 0
    // Predicated region
    $region2: #{tpu_custom_call.1} parent=1 // pred_check
      _
    $region3: #{tpu_custom_call.1} parent=1 // pred_check_branch
      %11 = sbr.rel (0) target = $region5
    $region4: #{tpu_custom_call.1} parent=1 // pred_region
      %13 = vsyncadd [#allocation3], 0
      %s14 = sshll.u32 %s0, 4
      %s15 = int_to_ptr.hbm [resolvable:$true] %s14
      %s16 = sshll.u32 [#allocation2], 4
      %s17 = int_to_ptr.vmem [resolvable:$true] %s16
      %22 = dma.hbm_to_vmem [thread:$0]  %s15, 128, %s17, [#allocation3], 64, 64, 4
    $region5: #{tpu_custom_call.1} parent=1 // pred_fallthru
      _
    // Predicated region
    $region6: #{tpu_custom_call.1} parent=1 // pred_check
      _
    $region7: #{tpu_custom_call.1} parent=1 // pred_check_branch
      %24 = sbr.rel (0) target = $region9
    $region8: #{tpu_custom_call.1} parent=1 // pred_region
      %26 = vsyncadd [#allocation6], 0
      %s27 = sshll.u32 %s1, 4
      %s28 = int_to_ptr.hbm [resolvable:$true] %s27
      %s29 = sshll.u32 [#allocation5], 4
      %s30 = int_to_ptr.vmem [resolvable:$true] %s29
      %35 = dma.hbm_to_vmem [thread:$0]  %s28, 1024, %s30, [#allocation6], 64, 64, 4
    $region9: #{tpu_custom_call.1} parent=1 // pred_fallthru
      _
    // Predicated region
    $region10: #{tpu_custom_call.1} parent=1 // pred_check
      _
    $region11: #{tpu_custom_call.1} parent=1 // pred_check_branch
      %37 = sbr.rel (0) target = $region13
    $region12: #{tpu_custom_call.1} parent=1 // pred_region
      %39 = dma.done [#allocation3], 128
    $region13: #{tpu_custom_call.1} parent=1 // pred_fallthru
      _
    // Predicated region
    $region14: #{tpu_custom_call.1} parent=1 // pred_check
      _
    $region15: #{tpu_custom_call.1} parent=1 // pred_check_branch
      %41 = sbr.rel (0) target = $region17
    $region16: #{tpu_custom_call.1} parent=1 // pred_region
      %43 = dma.done [#allocation6], 1024
    $region17: #{tpu_custom_call.1} parent=1 // pred_fallthru
      _
    %v44 = vld [vmem:[#allocation2] sm:$0xf]
    %v45 = vld [vmem:[#allocation2 + $0x4] sm:$0xf]
    %v46 = vld [vmem:[#allocation5] sm:$0xf]
    %v47 = vld [vmem:[#allocation5 + $0x4] sm:$0xf]
    %v48 = vld [vmem:[#allocation5 + $0x8] sm:$0xf]
    %v49 = vld [vmem:[#allocation5 + $0xc] sm:$0xf]
    %v50 = vld [vmem:[#allocation5 + $0x10] sm:$0xf]
    %v51 = vld [vmem:[#allocation5 + $0x14] sm:$0xf]
    %v52 = vld [vmem:[#allocation5 + $0x18] sm:$0xf]
    %v53 = vld [vmem:[#allocation5 + $0x1c] sm:$0xf]
    %v54 = vld [vmem:[#allocation5 + $0x20] sm:$0xf]
    %v55 = vld [vmem:[#allocation5 + $0x24] sm:$0xf]
    %v56 = vld [vmem:[#allocation5 + $0x28] sm:$0xf]
    %v57 = vld [vmem:[#allocation5 + $0x2c] sm:$0xf]
    %v58 = vld [vmem:[#allocation5 + $0x30] sm:$0xf]
    %v59 = vld [vmem:[#allocation5 + $0x34] sm:$0xf]
    %v60 = vld [vmem:[#allocation5 + $0x38] sm:$0xf]
    %v61 = vld [vmem:[#allocation5 + $0x3c] sm:$0xf]
    %v64 = vunpack.c.l.b16 %v44
    %v65 = vunpack.c.l.b16 %v45
    %v66 = vpack.c.b16 %v65, %v64
    %v84 = vunpack.c.l.b16 %v46
    %v85 = vunpack.c.l.b16 %v47
    %v86 = vunpack.c.l.b16 %v48
    %v87 = vunpack.c.l.b16 %v49
    %v88 = vunpack.c.l.b16 %v50
    %v89 = vunpack.c.l.b16 %v51
    %v90 = vunpack.c.l.b16 %v52
    %v91 = vunpack.c.l.b16 %v53
    %v92 = vunpack.c.l.b16 %v54
    %v93 = vunpack.c.l.b16 %v55
    %v94 = vunpack.c.l.b16 %v56
    %v95 = vunpack.c.l.b16 %v57
    %v96 = vunpack.c.l.b16 %v58
    %v97 = vunpack.c.l.b16 %v59
    %v98 = vunpack.c.l.b16 %v60
    %v99 = vunpack.c.l.b16 %v61
    %v100 = vpack.c.b16 %v85, %v84
    %v101 = vpack.c.b16 %v87, %v86
    %v102 = vpack.c.b16 %v89, %v88
    %v103 = vpack.c.b16 %v91, %v90
    %v104 = vpack.c.b16 %v93, %v92
    %v105 = vpack.c.b16 %v95, %v94
    %v106 = vpack.c.b16 %v97, %v96
    %v107 = vpack.c.b16 %v99, %v98
    %116 = vmatpush.bf16.msra.mxu0 %v107
    %117 = vmatpush.bf16.msra.mxu0 %v106
    %118 = vmatpush.bf16.msra.mxu0 %v105
    %119 = vmatpush.bf16.msra.mxu0 %v104
    %120 = vmatpush.bf16.msra.mxu0 %v103
    %121 = vmatpush.bf16.msra.mxu0 %v102
    %122 = vmatpush.bf16.msra.mxu0 %v101
    %123 = vmatpush.bf16.msra.mxu0 %v100
    %124 = vmatmul.bf16.gmra.mxu0 %v66
    %v125 = vpop.f32.mrf.mxu0
    %v126 = vadd.f32 0.0, %v125
    %v127 = vpop.f32.mrf.mxu0
    %v128 = vadd.f32 0.0, %v127
    %129 = vdwg.mxu0
    %130 = vst [vmem:[#allocation7] sm:$0xff] %v126
    %131 = vst [vmem:[#allocation7 + $0x8] sm:$0xff] %v128
    // Predicated region
    $region18: #{tpu_custom_call.1} parent=1 // pred_check
      _
    $region19: #{tpu_custom_call.1} parent=1 // pred_check_branch
      %133 = sbr.rel (0) target = $region21
    $region20: #{tpu_custom_call.1} parent=1 // pred_region
      %135 = vsyncadd [#allocation4], 0
      %s136 = sshll.u32 [#allocation7], 4
      %s137 = int_to_ptr.vmem [resolvable:$true] %s136
      %s138 = sshll.u32 %s2, 4
      %s139 = int_to_ptr.hbm [resolvable:$true] %s138
      %144 = dma.vmem_to_hbm [thread:$0]  %s137, 256, %s139, [#allocation4], 128, 128, 8
    $region21: #{tpu_custom_call.1} parent=1 // pred_fallthru
      _
    // Predicated region
    $region22: #{tpu_custom_call.1} parent=1 // pred_check
      _
    $region23: #{tpu_custom_call.1} parent=1 // pred_check_branch
      %146 = sbr.rel (0) target = $region25
    $region24: #{tpu_custom_call.1} parent=1 // pred_region
      %148 = dma.done [#allocation4], 256
    $region25: #{tpu_custom_call.1} parent=1 // pred_fallthru
      _
    %149 = vsyncpa [#allocation3], 1
    %150 = vsyncpa [#allocation6], 1
    %151 = vsyncpa [#allocation4], 1

</llo_original>
